<compile_context>
chip_gen: v5e
topology: v5e:2x2
jax: 0.10.0
libtpu: 0.0.40
codegen_flags: <defaults>
</compile_context>

<pallas_src>
import math
import functools

import jax
import jax.numpy as jnp
from jax.experimental import pallas as pl
from jax.experimental.pallas import tpu as pltpu


# ----------------------------- config ---------------------------------------
B = 2          # batch
S = 16         # sequence length
D_MODEL = 32   # d_model
N_HEADS = 4    # num_heads
D_KV = 8       # d_kv
INNER = N_HEADS * D_KV
NUM_BUCKETS = 32
MAX_DISTANCE = 128
LN_EPS = 1e-6
IS_DECODER = False  # bidirectional relative position buckets


# --------------------------- Pallas kernel ----------------------------------
def _t5_self_attn_kernel(x_ref, wqkv_ref, wo_ref, bias_ref, out_ref, *,
                         n_heads, d_kv, n_batch, seq_len, eps):
    """Single-invocation fused layer.

    x_ref    : (R, D)        residual input, R = B*S, float32
    wqkv_ref : (D, 3*INNER)  fused [Wq | Wk | Wv], T5LayerNorm gamma folded in
    wo_ref   : (H, Dk, D)    head-major output projection weight
    bias_ref : (H*B, S, S)   position bias (+mask), pre-expanded per (head, batch)
    out_ref  : (R, D)
    """
    x = x_ref[...]                                     # (R, D)
    rows = x.shape[0]
    inner = n_heads * d_kv
    gb = n_heads * n_batch

    # ---- T5LayerNorm (RMS norm: no mean subtraction, no bias; gamma folded
    #      into Wqkv in the wrapper, so only the rsqrt scaling remains) ----
    var = jnp.mean(x * x, axis=-1, keepdims=True)      # (R, 1)
    normed = x * jax.lax.rsqrt(var + eps)              # (R, D)

    # ---- fused Q/K/V projection: ONE flat MXU matmul (contraction D,
    #      3*INNER output lanes); no activation broadcast ----
    qkv = jnp.dot(normed, wqkv_ref[...],
                  preferred_element_type=jnp.float32)  # (R, 3*INNER)

    # Head split: static lane slices stacked on a new LEADING axis, then a
    # sublane regroup (H, B*S, Dk) -> (H*B, S, Dk) so every later einsum is a
    # single-leading-batch ("flash") contraction with no Python batch loop.
    def heads(col0):
        parts = [qkv[:, col0 + h * d_kv: col0 + (h + 1) * d_kv]
                 for h in range(n_heads)]              # H x (R, Dk)
        return jnp.stack(parts, axis=0).reshape(gb, seq_len, d_kv)

    q = heads(0)                                       # (H*B, S, Dk)
    k = heads(inner)
    v = heads(2 * inner)

    # ---- attention scores (no 1/sqrt(d) scaling in T5) + position bias ----
    s = jnp.einsum("gqd,gkd->gqk", q, k,
                   preferred_element_type=jnp.float32)  # (H*B, S, S)
    s = s + bias_ref[...]

    # fp32 softmax over the key axis; exact division for parity with torch
    # (attention dropout = identity in eval mode)
    s = s - jnp.max(s, axis=-1, keepdims=True)
    p = jnp.exp(s)
    p = p / jnp.sum(p, axis=-1, keepdims=True)

    ctx = jnp.einsum("gqk,gkd->gqd", p, v,
                     preferred_element_type=jnp.float32)  # (H*B, S, Dk)

    # ---- output projection + head sum (== concat(heads) @ Wo) ----
    ctx = ctx.reshape(n_heads, rows, d_kv)             # (H, R, Dk), free regroup
    o_h = jnp.einsum("hrd,hdm->hrm", ctx, wo_ref[...],
                     preferred_element_type=jnp.float32)  # (H, R, D)
    attn = jnp.sum(o_h, axis=0)                        # (R, D)

    # residual add (outer dropout = identity in eval mode)
    out_ref[...] = x + attn


# -------------------------- JAX glue / wrapper -------------------------------
def _relative_position_bucket(relative_position, bidirectional=True,
                              num_buckets=32, max_distance=128):
    """JAX port of T5Attention._relative_position_bucket (int32)."""
    relative_buckets = jnp.zeros_like(relative_position)
    if bidirectional:
        num_buckets //= 2
        relative_buckets = relative_buckets + (relative_position > 0).astype(jnp.int32) * num_buckets
        relative_position = jnp.abs(relative_position)
    else:
        relative_position = -jnp.minimum(relative_position, jnp.zeros_like(relative_position))
    max_exact = num_buckets // 2
    is_small = relative_position < max_exact
    # guard log(0): the guarded values fall in the is_small branch anyway
    rp_safe = jnp.maximum(relative_position, 1).astype(jnp.float32)
    rp_large = max_exact + (
        jnp.log(rp_safe / max_exact)
        / math.log(max_distance / max_exact)
        * (num_buckets - max_exact)
    ).astype(jnp.int32)
    rp_large = jnp.minimum(rp_large, jnp.full_like(rp_large, num_buckets - 1))
    relative_buckets = relative_buckets + jnp.where(is_small, relative_position, rp_large)
    return relative_buckets


def compute_position_bias(rel_attn_bias_emb, query_length, key_length):
    """Relative position bias -> (1, H, Sq, Sk) (runs in XLA, outside the kernel)."""
    ctx = jnp.arange(query_length, dtype=jnp.int32)[:, None]
    mem = jnp.arange(key_length, dtype=jnp.int32)[None, :]
    rel_pos = mem - ctx
    buckets = _relative_position_bucket(
        rel_pos, bidirectional=not IS_DECODER,
        num_buckets=NUM_BUCKETS, max_distance=MAX_DISTANCE)
    values = rel_attn_bias_emb[buckets]                 # (Sq, Sk, H)
    values = jnp.transpose(values, (2, 0, 1))[None]     # (1, H, Sq, Sk)
    return values


def prepare_params(params):
    """One-time (hoisted) weight re-layout, per review item 9.

    * Folds the T5LayerNorm gamma into Wq/Wk/Wv (exact: residual uses raw x,
      Wo is unaffected) and fuses them into a single (D, 3*INNER) matrix.
    * Reshapes Wo into head-major (H, Dk, D).
    """
    lnw = params["ln_weight"]                           # (D,)
    wq = params["wq"] * lnw[:, None]                    # (D, INNER)
    wk = params["wk"] * lnw[:, None]
    wv = params["wv"] * lnw[:, None]
    wqkv = jnp.concatenate([wq, wk, wv], axis=1)        # (D, 3*INNER)
    wo_h = params["wo"].reshape(N_HEADS, D_KV, D_MODEL)  # (H, Dk, D)
    return {"wqkv": wqkv, "wo_h": wo_h, "rel_bias": params["rel_bias"]}


def _bias_to_kernel_layout(position_bias, batch):
    """(Pb, H, S, S) -> (H*B, S, S), head-major / batch-minor, matching the
    kernel's flattened (head, batch) leading axis.  Runs in XLA, not the kernel."""
    _, h, sq, sk = position_bias.shape
    bias_t = jnp.transpose(position_bias, (1, 0, 2, 3))          # (H, Pb, S, S)
    bias_t = jnp.broadcast_to(bias_t, (h, batch, sq, sk))        # (H, B, S, S)
    return bias_t.reshape(h * batch, sq, sk)


def t5_layer_self_attention(hidden_states, prepared, attention_mask=None,
                            position_bias=None):
    """Returns (hidden_states_out, position_bias), matching the torch module."""
    b, s, d = hidden_states.shape
    n_heads, d_kv, _ = prepared["wo_h"].shape

    if position_bias is None:
        position_bias = compute_position_bias(prepared["rel_bias"], s, s)
        if attention_mask is not None:
            position_bias = position_bias + attention_mask
    position_bias = position_bias.astype(jnp.float32)

    bias_gb = _bias_to_kernel_layout(position_bias, b)            # (H*B, S, S)
    x2d = hidden_states.astype(jnp.float32).reshape(b * s, d)     # (R, D)

    kernel = functools.partial(_t5_self_attn_kernel, n_heads=n_heads,
                               d_kv=d_kv, n_batch=b, seq_len=s, eps=LN_EPS)

    # Single invocation: no grid, whole arrays resident in VMEM (total < 64 KB).
    out2d = pl.pallas_call(
        kernel,
        out_shape=jax.ShapeDtypeStruct((b * s, d), jnp.float32),
        in_specs=[
            pl.BlockSpec(memory_space=pltpu.MemorySpace.VMEM),    # x
            pl.BlockSpec(memory_space=pltpu.MemorySpace.VMEM),    # Wqkv (gamma folded)
            pl.BlockSpec(memory_space=pltpu.MemorySpace.VMEM),    # Wo (head-major)
            pl.BlockSpec(memory_space=pltpu.MemorySpace.VMEM),    # position bias
        ],
        out_specs=pl.BlockSpec(memory_space=pltpu.MemorySpace.VMEM),
    )(x2d, prepared["wqkv"], prepared["wo_h"], bias_gb)

    out = out2d.reshape(b, s, d)
    return out, position_bias


def init_params(key):
    k1, k2, k3, k4, k5 = jax.random.split(key, 5)
    scale = 0.05
    return {
        # T5LayerNorm weight initializes to ones
        "ln_weight": jnp.ones((D_MODEL,), jnp.float32),
        # stored as (in, out) so y = x @ W  (== torch x @ W^T)
        "wq": scale * jax.random.normal(k1, (D_MODEL, INNER), jnp.float32),
        "wk": scale * jax.random.normal(k2, (D_MODEL, INNER), jnp.float32),
        "wv": scale * jax.random.normal(k3, (D_MODEL, INNER), jnp.float32),
        "wo": scale * jax.random.normal(k4, (INNER, D_MODEL), jnp.float32),
        # relative_attention_bias embedding table (num_buckets, n_heads)
        "rel_bias": scale * jax.random.normal(k5, (NUM_BUCKETS, N_HEADS), jnp.float32),
    }


if __name__ == "__main__":
    key = jax.random.PRNGKey(0)
    kx, kp = jax.random.split(key)
    hidden_states = jax.random.normal(kx, (B, S, D_MODEL), jnp.float32)
    params = init_params(kp)

    prepared = prepare_params(params)          # hoisted one-time weight prep
    layer = jax.jit(t5_layer_self_attention)   # fuse the tiny XLA-side prep

    out, pos_bias = layer(hidden_states, prepared)
    jax.block_until_ready(out)
    jax.block_until_ready(pos_bias)
    assert out.shape == (B, S, D_MODEL)
    assert pos_bias.shape == (1, N_HEADS, S, S)
    print("KERNEL_OK")
</pallas_src>

<mosaic_0001>
module attributes {stable_mosaic.version = 11 : i64} {
  func.func @_t5_self_attn_kernel(%arg0: memref<32x32xf32, #tpu.memory_space<vmem>>, %arg1: memref<32x96xf32, #tpu.memory_space<vmem>>, %arg2: memref<4x8x32xf32, #tpu.memory_space<vmem>>, %arg3: memref<8x16x16xf32, #tpu.memory_space<vmem>>, %arg4: memref<32x32xf32, #tpu.memory_space<vmem>>) attributes {dimension_semantics = [], scalar_prefetch = 0 : i64, scratch_operands = 0 : i64, tpu.core_type = #tpu.core_type<tc>} {
    %c0 = arith.constant 0 : index
    %c0_0 = arith.constant 0 : index
    %0 = vector.load %arg0[%c0, %c0_0] : memref<32x32xf32, #tpu.memory_space<vmem>>, vector<32x32xf32>
    %1 = arith.mulf %0, %0 : vector<32x32xf32>
    %cst = arith.constant dense<0.000000e+00> : vector<32xf32>
    %2 = vector.multi_reduction <add>, %1, %cst [1] : vector<32x32xf32> to vector<32xf32>
    %3 = vector.shape_cast %2 : vector<32xf32> to vector<32x1xf32>
    %cst_1 = arith.constant 3.200000e+01 : f32
    %4 = vector.broadcast %cst_1 : f32 to vector<32x1xf32>
    %5 = arith.divf %3, %4 : vector<32x1xf32>
    %cst_2 = arith.constant 9.99999997E-7 : f32
    %6 = vector.broadcast %cst_2 : f32 to vector<32x1xf32>
    %7 = arith.addf %5, %6 : vector<32x1xf32>
    %8 = math.rsqrt %7 : vector<32x1xf32>
    %9 = vector.broadcast %8 : vector<32x1xf32> to vector<32x32xf32>
    %10 = arith.mulf %0, %9 : vector<32x32xf32>
    %c0_3 = arith.constant 0 : index
    %c0_4 = arith.constant 0 : index
    %11 = vector.load %arg1[%c0_3, %c0_4] : memref<32x96xf32, #tpu.memory_space<vmem>>, vector<32x96xf32>
    %cst_5 = arith.constant dense<0.000000e+00> : vector<32x96xf32>
    %12 = tpu.matmul %10, %11, %cst_5 {dimension_numbers = #tpu.dot_dimension_numbers<[1], [0], [0], [1], [0, 0, 1, 1], [], []>} : vector<32x32xf32>, vector<32x96xf32>, vector<32x96xf32> -> vector<32x96xf32>
    %13 = vector.extract_strided_slice %12 {offsets = [0, 0], sizes = [32, 8], strides = [1, 1]} : vector<32x96xf32> to vector<32x8xf32>
    %14 = vector.extract_strided_slice %12 {offsets = [0, 8], sizes = [32, 8], strides = [1, 1]} : vector<32x96xf32> to vector<32x8xf32>
    %15 = vector.extract_strided_slice %12 {offsets = [0, 16], sizes = [32, 8], strides = [1, 1]} : vector<32x96xf32> to vector<32x8xf32>
    %16 = vector.extract_strided_slice %12 {offsets = [0, 24], sizes = [32, 8], strides = [1, 1]} : vector<32x96xf32> to vector<32x8xf32>
    %17 = vector.shape_cast %13 : vector<32x8xf32> to vector<1x32x8xf32>
    %18 = vector.shape_cast %14 : vector<32x8xf32> to vector<1x32x8xf32>
    %19 = vector.shape_cast %15 : vector<32x8xf32> to vector<1x32x8xf32>
    %20 = vector.shape_cast %16 : vector<32x8xf32> to vector<1x32x8xf32>
    %21 = tpu.concatenate %17, %18, %19, %20 in 0 : vector<1x32x8xf32>, vector<1x32x8xf32>, vector<1x32x8xf32>, vector<1x32x8xf32> -> vector<4x32x8xf32>
    %22 = vector.shape_cast %21 : vector<4x32x8xf32> to vector<8x16x8xf32>
    %23 = vector.extract_strided_slice %12 {offsets = [0, 32], sizes = [32, 8], strides = [1, 1]} : vector<32x96xf32> to vector<32x8xf32>
    %24 = vector.extract_strided_slice %12 {offsets = [0, 40], sizes = [32, 8], strides = [1, 1]} : vector<32x96xf32> to vector<32x8xf32>
    %25 = vector.extract_strided_slice %12 {offsets = [0, 48], sizes = [32, 8], strides = [1, 1]} : vector<32x96xf32> to vector<32x8xf32>
    %26 = vector.extract_strided_slice %12 {offsets = [0, 56], sizes = [32, 8], strides = [1, 1]} : vector<32x96xf32> to vector<32x8xf32>
    %27 = vector.shape_cast %23 : vector<32x8xf32> to vector<1x32x8xf32>
    %28 = vector.shape_cast %24 : vector<32x8xf32> to vector<1x32x8xf32>
    %29 = vector.shape_cast %25 : vector<32x8xf32> to vector<1x32x8xf32>
    %30 = vector.shape_cast %26 : vector<32x8xf32> to vector<1x32x8xf32>
    %31 = tpu.concatenate %27, %28, %29, %30 in 0 : vector<1x32x8xf32>, vector<1x32x8xf32>, vector<1x32x8xf32>, vector<1x32x8xf32> -> vector<4x32x8xf32>
    %32 = vector.shape_cast %31 : vector<4x32x8xf32> to vector<8x16x8xf32>
    %33 = vector.extract_strided_slice %12 {offsets = [0, 64], sizes = [32, 8], strides = [1, 1]} : vector<32x96xf32> to vector<32x8xf32>
    %34 = vector.extract_strided_slice %12 {offsets = [0, 72], sizes = [32, 8], strides = [1, 1]} : vector<32x96xf32> to vector<32x8xf32>
    %35 = vector.extract_strided_slice %12 {offsets = [0, 80], sizes = [32, 8], strides = [1, 1]} : vector<32x96xf32> to vector<32x8xf32>
    %36 = vector.extract_strided_slice %12 {offsets = [0, 88], sizes = [32, 8], strides = [1, 1]} : vector<32x96xf32> to vector<32x8xf32>
    %37 = vector.shape_cast %33 : vector<32x8xf32> to vector<1x32x8xf32>
    %38 = vector.shape_cast %34 : vector<32x8xf32> to vector<1x32x8xf32>
    %39 = vector.shape_cast %35 : vector<32x8xf32> to vector<1x32x8xf32>
    %40 = vector.shape_cast %36 : vector<32x8xf32> to vector<1x32x8xf32>
    %41 = tpu.concatenate %37, %38, %39, %40 in 0 : vector<1x32x8xf32>, vector<1x32x8xf32>, vector<1x32x8xf32>, vector<1x32x8xf32> -> vector<4x32x8xf32>
    %42 = vector.shape_cast %41 : vector<4x32x8xf32> to vector<8x16x8xf32>
    "tpu.trace_start"() <{level = 10 : i32, message = "gqd,gkd->gqk"}> : () -> ()
    %cst_6 = arith.constant dense<0.000000e+00> : vector<8x16x16xf32>
    %43 = tpu.matmul %22, %32, %cst_6 {dimension_numbers = #tpu.dot_dimension_numbers<[2], [2], [1], [1], [0, 0, 0, 1, 1, 1], [0], [0]>} : vector<8x16x8xf32>, vector<8x16x8xf32>, vector<8x16x16xf32> -> vector<8x16x16xf32>
    "tpu.trace_stop"() : () -> ()
    %c0_7 = arith.constant 0 : index
    %c0_8 = arith.constant 0 : index
    %c0_9 = arith.constant 0 : index
    %44 = vector.load %arg3[%c0_7, %c0_8, %c0_9] : memref<8x16x16xf32, #tpu.memory_space<vmem>>, vector<8x16x16xf32>
    %45 = arith.addf %43, %44 : vector<8x16x16xf32>
    %cst_10 = arith.constant dense<0xFF800000> : vector<8x16xf32>
    %46 = vector.multi_reduction <maximumf>, %45, %cst_10 [2] : vector<8x16x16xf32> to vector<8x16xf32>
    %47 = vector.shape_cast %46 : vector<8x16xf32> to vector<8x16x1xf32>
    %48 = vector.broadcast %47 : vector<8x16x1xf32> to vector<8x16x16xf32>
    %49 = arith.subf %45, %48 : vector<8x16x16xf32>
    %50 = math.exp %49 : vector<8x16x16xf32>
    %cst_11 = arith.constant dense<0.000000e+00> : vector<8x16xf32>
    %51 = vector.multi_reduction <add>, %50, %cst_11 [2] : vector<8x16x16xf32> to vector<8x16xf32>
    %52 = vector.shape_cast %51 : vector<8x16xf32> to vector<8x16x1xf32>
    %53 = vector.broadcast %52 : vector<8x16x1xf32> to vector<8x16x16xf32>
    %54 = arith.divf %50, %53 : vector<8x16x16xf32>
    "tpu.trace_start"() <{level = 10 : i32, message = "gqk,gkd->gqd"}> : () -> ()
    %cst_12 = arith.constant dense<0.000000e+00> : vector<8x16x8xf32>
    %55 = tpu.matmul %54, %42, %cst_12 {dimension_numbers = #tpu.dot_dimension_numbers<[2], [1], [1], [2], [0, 0, 0, 1, 1, 2], [0], [0]>} : vector<8x16x16xf32>, vector<8x16x8xf32>, vector<8x16x8xf32> -> vector<8x16x8xf32>
    "tpu.trace_stop"() : () -> ()
    %56 = vector.shape_cast %55 : vector<8x16x8xf32> to vector<4x32x8xf32>
    %c0_13 = arith.constant 0 : index
    %c0_14 = arith.constant 0 : index
    %c0_15 = arith.constant 0 : index
    %57 = vector.load %arg2[%c0_13, %c0_14, %c0_15] : memref<4x8x32xf32, #tpu.memory_space<vmem>>, vector<4x8x32xf32>
    "tpu.trace_start"() <{level = 10 : i32, message = "hrd,hdm->hrm"}> : () -> ()
    %cst_16 = arith.constant dense<0.000000e+00> : vector<4x32x32xf32>
    %58 = tpu.matmul %56, %57, %cst_16 {dimension_numbers = #tpu.dot_dimension_numbers<[2], [1], [1], [2], [0, 0, 0, 1, 1, 2], [0], [0]>} : vector<4x32x8xf32>, vector<4x8x32xf32>, vector<4x32x32xf32> -> vector<4x32x32xf32>
    "tpu.trace_stop"() : () -> ()
    %cst_17 = arith.constant dense<0.000000e+00> : vector<32x32xf32>
    %59 = vector.multi_reduction <add>, %58, %cst_17 [0] : vector<4x32x32xf32> to vector<32x32xf32>
    %60 = arith.addf %0, %59 : vector<32x32xf32>
    %c0_18 = arith.constant 0 : index
    %c0_19 = arith.constant 0 : index
    %61 = vector.load %arg4[%c0_18, %c0_19] : memref<32x32xf32, #tpu.memory_space<vmem>>, vector<32x32xf32>
    tpu.vector_store %arg4[%c0_18, %c0_19], %60 {strides = array<i32>} : memref<32x32xf32, #tpu.memory_space<vmem>>, vector<32x32xf32>,
    return
  }
}

</mosaic_0001>

<llo_original>
// kernel: t5_layer_self_attention.1
$region0: #{t5_layer_self_attention.1}
  #allocation0 [shape = 'u32[]', space=smem, size = 0x4, offset = 0x4, fixed_abs, tag = 'smem constant byte address 0x4 - core index']
  #allocation1 [shape = 'u32[72,128]{1,0:T(1,128)}', space=vmem, size = 0x9000, scoped, tag = 'internal scratch']
  %s0 = inlined_call_operand.vmem [shape: f32[32,32], index: 0, kind: input, shape index: {}]
  %s1 = inlined_call_operand.vmem [shape: f32[32,96], index: 1, kind: input, shape index: {}]
  %s2 = inlined_call_operand.vmem [shape: f32[4,8,32], index: 2, kind: input, shape index: {}]
  %s3 = inlined_call_operand.vmem [shape: f32[8,16,16], index: 3, kind: input, shape index: {}]
  %s4 = inlined_call_operand.hbm [shape: f32[32,32], index: 4, kind: output, shape index: {}]
  %s5 = sld [smem:[#allocation0]]
  $region26: #{t5_layer_self_attention.1} parent=0
    _
  %s7 = ssub.s32 1, %s5
  %s8 = scalar_select 0, %s7, %s5
  $region1: #{t5_layer_self_attention.1} parent=0
    #allocation2 [shape = 'u8[16384]{0}', space=vmem, size = 0x4000, scoped, tag = 'output window, operand 0, single buffered']
    #allocation3 [shape = 's32[1]{0}', space=sflag, size = 0x4, scoped, tag = 'scoped memory for t5_layer_self_attention.1']
    %9 = vsyncpa [#allocation3], 0
    // Predicated region
    $region2: #{t5_layer_self_attention.1} parent=1 // pred_check
      _
    $region3: #{t5_layer_self_attention.1} parent=1 // pred_check_branch
      %11 = sbr.rel (0) target = $region5
    $region4: #{t5_layer_self_attention.1} parent=1 // pred_region
      _
    $region5: #{t5_layer_self_attention.1} parent=1 // pred_fallthru
      _
    // Predicated region
    $region6: #{t5_layer_self_attention.1} parent=1 // pred_check
      _
    $region7: #{t5_layer_self_attention.1} parent=1 // pred_check_branch
      %13 = sbr.rel (0) target = $region9
    $region8: #{t5_layer_self_attention.1} parent=1 // pred_region
      _
    $region9: #{t5_layer_self_attention.1} parent=1 // pred_fallthru
      _
    // Predicated region
    $region10: #{t5_layer_self_attention.1} parent=1 // pred_check
      _
    $region11: #{t5_layer_self_attention.1} parent=1 // pred_check_branch
      %15 = sbr.rel (0) target = $region13
    $region12: #{t5_layer_self_attention.1} parent=1 // pred_region
      _
    $region13: #{t5_layer_self_attention.1} parent=1 // pred_fallthru
      _
    // Predicated region
    $region14: #{t5_layer_self_attention.1} parent=1 // pred_check
      _
    $region15: #{t5_layer_self_attention.1} parent=1 // pred_check_branch
      %17 = sbr.rel (0) target = $region17
    $region16: #{t5_layer_self_attention.1} parent=1 // pred_region
      _
    $region17: #{t5_layer_self_attention.1} parent=1 // pred_fallthru
      _
    %v18 = vld [vmem:[%s0] sm:$0xff]
    %v19 = vld [vmem:[%s0 + $0x8] sm:$0xff]
    %v20 = vld [vmem:[%s0 + $0x10] sm:$0xff]
    %v21 = vld [vmem:[%s0 + $0x18] sm:$0xff]
    %v22 = vmul.f32 %v18, %v18
    %v23 = vmul.f32 %v19, %v19
    %v24 = vmul.f32 %v20, %v20
    %v25 = vmul.f32 %v21, %v21
    %vm26 = vcmask 261120
    %v27 = vsel %vm26, %v22, 0.0
    %28 = vadd.xlane.f32.xlu0 %v27
    %v29 = vpop.xlane.xlu0 %28
    %v30 = vsel %vm26, %v23, 0.0
    %31 = vadd.xlane.f32.xlu0 %v30
    %v32 = vpop.xlane.xlu0 %31
    %v33 = vsel %vm26, %v24, 0.0
    %34 = vadd.xlane.f32.xlu0 %v33
    %v35 = vpop.xlane.xlu0 %34
    %v36 = vsel %vm26, %v25, 0.0
    %37 = vadd.xlane.f32.xlu0 %v36
    %v38 = vpop.xlane.xlu0 %37
    %v39 = vrcp.pop 32.0
    %v40 = vmul.f32 32.0, %v39
    %v41 = vsub.f32 1.0, %v40
    %v42 = vmul.f32 %v39, %v41
    %v43 = vadd.f32 %v39, %v42
    %vm44 = vweird.f32 %v39
    %v45 = vsel %vm44, %v39, %v43
    %v46 = vmul.f32 %v29, %v45
    %v47 = vmul.f32 %v32, %v45
    %v48 = vmul.f32 %v35, %v45
    %v49 = vmul.f32 %v38, %v45
    %v50 = vadd.f32 %v46, 1e-06
    %v51 = vadd.f32 %v47, 1e-06
    %v52 = vadd.f32 %v48, 1e-06
    %v53 = vadd.f32 %v49, 1e-06
    %v54 = vrsqrt.pop %v50
    %v55 = vmul.f32 %v54, %v50
    %v56 = vmul.f32 %v55, %v54
    %v57 = vmul.f32 0.5, %v56
    %v58 = vsub.f32 1.5, %v57
    %v59 = vmul.f32 %v54, %v58
    %vm60 = vweird.f32 %v50
    %vm61 = vweird.f32 %v54
    %vm62 = vmor %vm60, %vm61
    %v63 = vsel %vm62, %v54, %v59
    %v64 = vrsqrt.pop %v51
    %v65 = vmul.f32 %v64, %v51
    %v66 = vmul.f32 %v65, %v64
    %v67 = vmul.f32 0.5, %v66
    %v68 = vsub.f32 1.5, %v67
    %v69 = vmul.f32 %v64, %v68
    %vm70 = vweird.f32 %v51
    %vm71 = vweird.f32 %v64
    %vm72 = vmor %vm70, %vm71
    %v73 = vsel %vm72, %v64, %v69
    %v74 = vrsqrt.pop %v52
    %v75 = vmul.f32 %v74, %v52
    %v76 = vmul.f32 %v75, %v74
    %v77 = vmul.f32 0.5, %v76
    %v78 = vsub.f32 1.5, %v77
    %v79 = vmul.f32 %v74, %v78
    %vm80 = vweird.f32 %v52
    %vm81 = vweird.f32 %v74
    %vm82 = vmor %vm80, %vm81
    %v83 = vsel %vm82, %v74, %v79
    %v84 = vrsqrt.pop %v53
    %v85 = vmul.f32 %v84, %v53
    %v86 = vmul.f32 %v85, %v84
    %v87 = vmul.f32 0.5, %v86
    %v88 = vsub.f32 1.5, %v87
    %v89 = vmul.f32 %v84, %v88
    %vm90 = vweird.f32 %v53
    %vm91 = vweird.f32 %v84
    %vm92 = vmor %vm90, %vm91
    %v93 = vsel %vm92, %v84, %v89
    %v94 = vmul.f32 %v18, %v63
    %v95 = vmul.f32 %v19, %v73
    %v96 = vmul.f32 %v20, %v83
    %v97 = vmul.f32 %v21, %v93
    %v98 = vld [vmem:[%s1] sm:$0xff]
    %v99 = vld [vmem:[%s1 + $0x8] sm:$0xff]
    %v100 = vld [vmem:[%s1 + $0x10] sm:$0xff]
    %v101 = vld [vmem:[%s1 + $0x18] sm:$0xff]
    %v103 = vsel %vm26, %v94, 0
    %v106 = vsel %vm26, %v95, 0
    %v109 = vsel %vm26, %v96, 0
    %v112 = vsel %vm26, %v97, 0
    %114 = vmatpush.msra.mxu0 0.0
    %115 = vmatpush.msra.mxu0 0.0
    %116 = vmatpush.msra.mxu0 0.0
    %117 = vmatpush.msra.mxu0 0.0
    %118 = vmatpush.msra.mxu0 0.0
    %119 = vmatpush.msra.mxu0 0.0
    %120 = vmatpush.msra.mxu0 0.0
    %121 = vmatpush.msra.mxu0 0.0
    %122 = vmatpush.msra.mxu0 0.0
    %123 = vmatpush.msra.mxu0 0.0
    %124 = vmatpush.msra.mxu0 0.0
    %125 = vmatpush.msra.mxu0 0.0
    %126 = vmatpush.msra.mxu0 %v101
    %127 = vmatpush.msra.mxu0 %v100
    %128 = vmatpush.msra.mxu0 %v99
    %129 = vmatpush.msra.mxu0 %v98
    %130 = vmatmul.f32.gmra.mxu0 %v103
    %v131 = vpop.f32.mrf.mxu0
    %v132 = vadd.f32 0.0, %v131
    %133 = vmatmul.f32.gmra.mxu0 %v106
    %v134 = vpop.f32.mrf.mxu0
    %v135 = vadd.f32 0.0, %v134
    %136 = vmatmul.f32.gmra.mxu0 %v109
    %v137 = vpop.f32.mrf.mxu0
    %v138 = vadd.f32 0.0, %v137
    %139 = vmatmul.f32.gmra.mxu0 %v112
    %v140 = vpop.f32.mrf.mxu0
    %v141 = vadd.f32 0.0, %v140
    %142 = vdwg.mxu0
    %147 = vrot.lane.b32.xlu0 %v132, 120
    %v148 = vpop.permute.xlu0 %147
    %149 = vrot.lane.b32.xlu0 %v135, 120
    %v150 = vpop.permute.xlu0 %149
    %151 = vrot.lane.b32.xlu0 %v138, 120
    %v152 = vpop.permute.xlu0 %151
    %153 = vrot.lane.b32.xlu0 %v141, 120
    %v154 = vpop.permute.xlu0 %153
    %155 = vrot.lane.b32.xlu0 %v132, 112
    %v156 = vpop.permute.xlu0 %155
    %157 = vrot.lane.b32.xlu0 %v135, 112
    %v158 = vpop.permute.xlu0 %157
    %159 = vrot.lane.b32.xlu0 %v138, 112
    %v160 = vpop.permute.xlu0 %159
    %161 = vrot.lane.b32.xlu0 %v141, 112
    %v162 = vpop.permute.xlu0 %161
    %163 = vrot.lane.b32.xlu0 %v132, 104
    %v164 = vpop.permute.xlu0 %163
    %165 = vrot.lane.b32.xlu0 %v135, 104
    %v166 = vpop.permute.xlu0 %165
    %167 = vrot.lane.b32.xlu0 %v138, 104
    %v168 = vpop.permute.xlu0 %167
    %169 = vrot.lane.b32.xlu0 %v141, 104
    %v170 = vpop.permute.xlu0 %169
    %v171 = vld [vmem:[%s3] sm:$0xff]
    %v172 = vld [vmem:[%s3 + $0x8] sm:$0xff]
    %v173 = vld [vmem:[%s3 + $0x10] sm:$0xff]
    %v174 = vld [vmem:[%s3 + $0x18] sm:$0xff]
    %v175 = vld [vmem:[%s3 + $0x20] sm:$0xff]
    %v176 = vld [vmem:[%s3 + $0x28] sm:$0xff]
    %v177 = vld [vmem:[%s3 + $0x30] sm:$0xff]
    %v178 = vld [vmem:[%s3 + $0x38] sm:$0xff]
    %v179 = vld [vmem:[%s3 + $0x40] sm:$0xff]
    %v180 = vld [vmem:[%s3 + $0x48] sm:$0xff]
    %v181 = vld [vmem:[%s3 + $0x50] sm:$0xff]
    %v182 = vld [vmem:[%s3 + $0x58] sm:$0xff]
    %v183 = vld [vmem:[%s3 + $0x60] sm:$0xff]
    %v184 = vld [vmem:[%s3 + $0x68] sm:$0xff]
    %v185 = vld [vmem:[%s3 + $0x70] sm:$0xff]
    %v186 = vld [vmem:[%s3 + $0x78] sm:$0xff]
    %187 = vrot.lane.b32.xlu0 %v132, 96
    %v188 = vpop.permute.xlu0 %187
    %189 = vrot.lane.b32.xlu0 %v135, 96
    %v190 = vpop.permute.xlu0 %189
    %vm191 = vcmask 64512
    %v192 = vsel %vm191, %v132, 0
    %v194 = vsel %vm191, %v135, 0
    %v196 = vsel %vm191, %v188, 0
    %v198 = vsel %vm191, %v190, 0
    %200 = vmatpush.xpose.msra.mxu0 0.0
    %201 = vmatpush.xpose.msra.mxu0 0.0
    %202 = vmatpush.xpose.msra.mxu0 0.0
    %203 = vmatpush.xpose.msra.mxu0 0.0
    %204 = vmatpush.xpose.msra.mxu0 0.0
    %205 = vmatpush.xpose.msra.mxu0 0.0
    %206 = vmatpush.xpose.msra.mxu0 0.0
    %207 = vmatpush.xpose.msra.mxu0 0.0
    %208 = vmatpush.xpose.msra.mxu0 0.0
    %209 = vmatpush.xpose.msra.mxu0 0.0
    %210 = vmatpush.xpose.msra.mxu0 0.0
    %211 = vmatpush.xpose.msra.mxu0 0.0
    %212 = vmatpush.xpose.msra.mxu0 0.0
    %213 = vmatpush.xpose.msra.mxu0 0.0
    %214 = vmatpush.xpose.msra.mxu0 %v198
    %215 = vmatpush.xpose.msra.mxu0 %v196
    %216 = vmatmul.f32.gmra.mxu0 %v192
    %v217 = vpop.f32.mrf.mxu0
    %v218 = vadd.f32 %v171, %v217
    %219 = vmatmul.f32.gmra.mxu0 %v194
    %v220 = vpop.f32.mrf.mxu0
    %v221 = vadd.f32 %v172, %v220
    %222 = vdwg.mxu0
    %223 = vrot.lane.b32.xlu0 %v138, 96
    %v224 = vpop.permute.xlu0 %223
    %225 = vrot.lane.b32.xlu0 %v141, 96
    %v226 = vpop.permute.xlu0 %225
    %v227 = vsel %vm191, %v138, 0
    %v229 = vsel %vm191, %v141, 0
    %v231 = vsel %vm191, %v224, 0
    %v233 = vsel %vm191, %v226, 0
    %235 = vmatpush.xpose.msra.mxu0 0.0
    %236 = vmatpush.xpose.msra.mxu0 0.0
    %237 = vmatpush.xpose.msra.mxu0 0.0
    %238 = vmatpush.xpose.msra.mxu0 0.0
    %239 = vmatpush.xpose.msra.mxu0 0.0
    %240 = vmatpush.xpose.msra.mxu0 0.0
    %241 = vmatpush.xpose.msra.mxu0 0.0
    %242 = vmatpush.xpose.msra.mxu0 0.0
    %243 = vmatpush.xpose.msra.mxu0 0.0
    %244 = vmatpush.xpose.msra.mxu0 0.0
    %245 = vmatpush.xpose.msra.mxu0 0.0
    %246 = vmatpush.xpose.msra.mxu0 0.0
    %247 = vmatpush.xpose.msra.mxu0 0.0
    %248 = vmatpush.xpose.msra.mxu0 0.0
    %249 = vmatpush.xpose.msra.mxu0 %v233
    %250 = vmatpush.xpose.msra.mxu0 %v231
    %251 = vmatmul.f32.gmra.mxu0 %v227
    %v252 = vpop.f32.mrf.mxu0
    %v253 = vadd.f32 %v173, %v252
    %254 = vmatmul.f32.gmra.mxu0 %v229
    %v255 = vpop.f32.mrf.mxu0
    %v256 = vadd.f32 %v174, %v255
    %257 = vdwg.mxu0
    %258 = vrot.lane.b32.xlu0 %v148, 96
    %v259 = vpop.permute.xlu0 %258
    %260 = vrot.lane.b32.xlu0 %v150, 96
    %v261 = vpop.permute.xlu0 %260
    %v262 = vsel %vm191, %v148, 0
    %v264 = vsel %vm191, %v150, 0
    %v266 = vsel %vm191, %v259, 0
    %v268 = vsel %vm191, %v261, 0
    %270 = vmatpush.xpose.msra.mxu0 0.0
    %271 = vmatpush.xpose.msra.mxu0 0.0
    %272 = vmatpush.xpose.msra.mxu0 0.0
    %273 = vmatpush.xpose.msra.mxu0 0.0
    %274 = vmatpush.xpose.msra.mxu0 0.0
    %275 = vmatpush.xpose.msra.mxu0 0.0
    %276 = vmatpush.xpose.msra.mxu0 0.0
    %277 = vmatpush.xpose.msra.mxu0 0.0
    %278 = vmatpush.xpose.msra.mxu0 0.0
    %279 = vmatpush.xpose.msra.mxu0 0.0
    %280 = vmatpush.xpose.msra.mxu0 0.0
    %281 = vmatpush.xpose.msra.mxu0 0.0
    %282 = vmatpush.xpose.msra.mxu0 0.0
    %283 = vmatpush.xpose.msra.mxu0 0.0
    %284 = vmatpush.xpose.msra.mxu0 %v268
    %285 = vmatpush.xpose.msra.mxu0 %v266
    %286 = vmatmul.f32.gmra.mxu0 %v262
    %v287 = vpop.f32.mrf.mxu0
    %v288 = vadd.f32 %v175, %v287
    %289 = vmatmul.f32.gmra.mxu0 %v264
    %v290 = vpop.f32.mrf.mxu0
    %v291 = vadd.f32 %v176, %v290
    %292 = vdwg.mxu0
    %293 = vrot.lane.b32.xlu0 %v152, 96
    %v294 = vpop.permute.xlu0 %293
    %295 = vrot.lane.b32.xlu0 %v154, 96
    %v296 = vpop.permute.xlu0 %295
    %v297 = vsel %vm191, %v152, 0
    %v299 = vsel %vm191, %v154, 0
    %v301 = vsel %vm191, %v294, 0
    %v303 = vsel %vm191, %v296, 0
    %305 = vmatpush.xpose.msra.mxu0 0.0
    %306 = vmatpush.xpose.msra.mxu0 0.0
    %307 = vmatpush.xpose.msra.mxu0 0.0
    %308 = vmatpush.xpose.msra.mxu0 0.0
    %309 = vmatpush.xpose.msra.mxu0 0.0
    %310 = vmatpush.xpose.msra.mxu0 0.0
    %311 = vmatpush.xpose.msra.mxu0 0.0
    %312 = vmatpush.xpose.msra.mxu0 0.0
    %313 = vmatpush.xpose.msra.mxu0 0.0
    %314 = vmatpush.xpose.msra.mxu0 0.0
    %315 = vmatpush.xpose.msra.mxu0 0.0
    %316 = vmatpush.xpose.msra.mxu0 0.0
    %317 = vmatpush.xpose.msra.mxu0 0.0
    %318 = vmatpush.xpose.msra.mxu0 0.0
    %319 = vmatpush.xpose.msra.mxu0 %v303
    %320 = vmatpush.xpose.msra.mxu0 %v301
    %321 = vmatmul.f32.gmra.mxu0 %v297
    %v322 = vpop.f32.mrf.mxu0
    %v323 = vadd.f32 %v177, %v322
    %324 = vmatmul.f32.gmra.mxu0 %v299
    %v325 = vpop.f32.mrf.mxu0
    %v326 = vadd.f32 %v178, %v325
    %327 = vdwg.mxu0
    %328 = vrot.lane.b32.xlu0 %v156, 96
    %v329 = vpop.permute.xlu0 %328
    %330 = vrot.lane.b32.xlu0 %v158, 96
    %v331 = vpop.permute.xlu0 %330
    %v332 = vsel %vm191, %v156, 0
    %v334 = vsel %vm191, %v158, 0
    %v336 = vsel %vm191, %v329, 0
    %v338 = vsel %vm191, %v331, 0
    %340 = vmatpush.xpose.msra.mxu0 0.0
    %341 = vmatpush.xpose.msra.mxu0 0.0
    %342 = vmatpush.xpose.msra.mxu0 0.0
    %343 = vmatpush.xpose.msra.mxu0 0.0
    %344 = vmatpush.xpose.msra.mxu0 0.0
    %345 = vmatpush.xpose.msra.mxu0 0.0
    %346 = vmatpush.xpose.msra.mxu0 0.0
    %347 = vmatpush.xpose.msra.mxu0 0.0
    %348 = vmatpush.xpose.msra.mxu0 0.0
    %349 = vmatpush.xpose.msra.mxu0 0.0
    %350 = vmatpush.xpose.msra.mxu0 0.0
    %351 = vmatpush.xpose.msra.mxu0 0.0
    %352 = vmatpush.xpose.msra.mxu0 0.0
    %353 = vmatpush.xpose.msra.mxu0 0.0
    %354 = vmatpush.xpose.msra.mxu0 %v338
    %355 = vmatpush.xpose.msra.mxu0 %v336
    %356 = vmatmul.f32.gmra.mxu0 %v332
    %v357 = vpop.f32.mrf.mxu0
    %v358 = vadd.f32 %v179, %v357
    %359 = vmatmul.f32.gmra.mxu0 %v334
    %v360 = vpop.f32.mrf.mxu0
    %v361 = vadd.f32 %v180, %v360
    %362 = vdwg.mxu0
    %363 = vrot.lane.b32.xlu0 %v160, 96
    %v364 = vpop.permute.xlu0 %363
    %365 = vrot.lane.b32.xlu0 %v162, 96
    %v366 = vpop.permute.xlu0 %365
    %v367 = vsel %vm191, %v160, 0
    %v369 = vsel %vm191, %v162, 0
    %v371 = vsel %vm191, %v364, 0
    %v373 = vsel %vm191, %v366, 0
    %375 = vmatpush.xpose.msra.mxu0 0.0
    %376 = vmatpush.xpose.msra.mxu0 0.0
    %377 = vmatpush.xpose.msra.mxu0 0.0
    %378 = vmatpush.xpose.msra.mxu0 0.0
    %379 = vmatpush.xpose.msra.mxu0 0.0
    %380 = vmatpush.xpose.msra.mxu0 0.0
    %381 = vmatpush.xpose.msra.mxu0 0.0
    %382 = vmatpush.xpose.msra.mxu0 0.0
    %383 = vmatpush.xpose.msra.mxu0 0.0
    %384 = vmatpush.xpose.msra.mxu0 0.0
    %385 = vmatpush.xpose.msra.mxu0 0.0
    %386 = vmatpush.xpose.msra.mxu0 0.0
    %387 = vmatpush.xpose.msra.mxu0 0.0
    %388 = vmatpush.xpose.msra.mxu0 0.0
    %389 = vmatpush.xpose.msra.mxu0 %v373
    %390 = vmatpush.xpose.msra.mxu0 %v371
    %391 = vmatmul.f32.gmra.mxu0 %v367
    %v392 = vpop.f32.mrf.mxu0
    %v393 = vadd.f32 %v181, %v392
    %394 = vmatmul.f32.gmra.mxu0 %v369
    %v395 = vpop.f32.mrf.mxu0
    %v396 = vadd.f32 %v182, %v395
    %397 = vdwg.mxu0
    %398 = vrot.lane.b32.xlu0 %v164, 96
    %v399 = vpop.permute.xlu0 %398
    %400 = vrot.lane.b32.xlu0 %v166, 96
    %v401 = vpop.permute.xlu0 %400
    %v402 = vsel %vm191, %v164, 0
    %v404 = vsel %vm191, %v166, 0
    %v406 = vsel %vm191, %v399, 0
    %v408 = vsel %vm191, %v401, 0
    %410 = vmatpush.xpose.msra.mxu0 0.0
    %411 = vmatpush.xpose.msra.mxu0 0.0
    %412 = vmatpush.xpose.msra.mxu0 0.0
    %413 = vmatpush.xpose.msra.mxu0 0.0
    %414 = vmatpush.xpose.msra.mxu0 0.0
    %415 = vmatpush.xpose.msra.mxu0 0.0
    %416 = vmatpush.xpose.msra.mxu0 0.0
    %417 = vmatpush.xpose.msra.mxu0 0.0
    %418 = vmatpush.xpose.msra.mxu0 0.0
    %419 = vmatpush.xpose.msra.mxu0 0.0
    %420 = vmatpush.xpose.msra.mxu0 0.0
    %421 = vmatpush.xpose.msra.mxu0 0.0
    %422 = vmatpush.xpose.msra.mxu0 0.0
    %423 = vmatpush.xpose.msra.mxu0 0.0
    %424 = vmatpush.xpose.msra.mxu0 %v408
    %425 = vmatpush.xpose.msra.mxu0 %v406
    %426 = vmatmul.f32.gmra.mxu0 %v402
    %v427 = vpop.f32.mrf.mxu0
    %v428 = vadd.f32 %v183, %v427
    %429 = vmatmul.f32.gmra.mxu0 %v404
    %v430 = vpop.f32.mrf.mxu0
    %v431 = vadd.f32 %v184, %v430
    %432 = vdwg.mxu0
    %433 = vrot.lane.b32.xlu0 %v168, 96
    %v434 = vpop.permute.xlu0 %433
    %435 = vrot.lane.b32.xlu0 %v170, 96
    %v436 = vpop.permute.xlu0 %435
    %v437 = vsel %vm191, %v168, 0
    %v439 = vsel %vm191, %v170, 0
    %v441 = vsel %vm191, %v434, 0
    %v443 = vsel %vm191, %v436, 0
    %445 = vmatpush.xpose.msra.mxu0 0.0
    %446 = vmatpush.xpose.msra.mxu0 0.0
    %447 = vmatpush.xpose.msra.mxu0 0.0
    %448 = vmatpush.xpose.msra.mxu0 0.0
    %449 = vmatpush.xpose.msra.mxu0 0.0
    %450 = vmatpush.xpose.msra.mxu0 0.0
    %451 = vmatpush.xpose.msra.mxu0 0.0
    %452 = vmatpush.xpose.msra.mxu0 0.0
    %453 = vmatpush.xpose.msra.mxu0 0.0
    %454 = vmatpush.xpose.msra.mxu0 0.0
    %455 = vmatpush.xpose.msra.mxu0 0.0
    %456 = vmatpush.xpose.msra.mxu0 0.0
    %457 = vmatpush.xpose.msra.mxu0 0.0
    %458 = vmatpush.xpose.msra.mxu0 0.0
    %459 = vmatpush.xpose.msra.mxu0 %v443
    %460 = vmatpush.xpose.msra.mxu0 %v441
    %461 = vmatmul.f32.gmra.mxu0 %v437
    %v462 = vpop.f32.mrf.mxu0
    %v463 = vadd.f32 %v185, %v462
    %464 = vmatmul.f32.gmra.mxu0 %v439
    %v465 = vpop.f32.mrf.mxu0
    %v466 = vadd.f32 %v186, %v465
    %467 = vdwg.mxu0
    %vm468 = vcmask 130048
    %v469 = vsel %vm468, %v218, -inf
    %470 = vmax.xlane.f32.xlu0 %v469
    %v471 = vpop.xlane.xlu0 %470
    %v472 = vsel %vm468, %v221, -inf
    %473 = vmax.xlane.f32.xlu0 %v472
    %v474 = vpop.xlane.xlu0 %473
    %v475 = vsel %vm468, %v253, -inf
    %476 = vmax.xlane.f32.xlu0 %v475
    %v477 = vpop.xlane.xlu0 %476
    %v478 = vsel %vm468, %v256, -inf
    %479 = vmax.xlane.f32.xlu0 %v478
    %v480 = vpop.xlane.xlu0 %479
    %v481 = vsel %vm468, %v288, -inf
    %482 = vmax.xlane.f32.xlu0 %v481
    %v483 = vpop.xlane.xlu0 %482
    %v484 = vsel %vm468, %v291, -inf
    %485 = vmax.xlane.f32.xlu0 %v484
    %v486 = vpop.xlane.xlu0 %485
    %v487 = vsel %vm468, %v323, -inf
    %488 = vmax.xlane.f32.xlu0 %v487
    %v489 = vpop.xlane.xlu0 %488
    %v490 = vsel %vm468, %v326, -inf
    %491 = vmax.xlane.f32.xlu0 %v490
    %v492 = vpop.xlane.xlu0 %491
    %v493 = vsel %vm468, %v358, -inf
    %494 = vmax.xlane.f32.xlu0 %v493
    %v495 = vpop.xlane.xlu0 %494
    %v496 = vsel %vm468, %v361, -inf
    %497 = vmax.xlane.f32.xlu0 %v496
    %v498 = vpop.xlane.xlu0 %497
    %v499 = vsel %vm468, %v393, -inf
    %500 = vmax.xlane.f32.xlu0 %v499
    %v501 = vpop.xlane.xlu0 %500
    %v502 = vsel %vm468, %v396, -inf
    %503 = vmax.xlane.f32.xlu0 %v502
    %v504 = vpop.xlane.xlu0 %503
    %v505 = vsel %vm468, %v428, -inf
    %506 = vmax.xlane.f32.xlu0 %v505
    %v507 = vpop.xlane.xlu0 %506
    %v508 = vsel %vm468, %v431, -inf
    %509 = vmax.xlane.f32.xlu0 %v508
    %v510 = vpop.xlane.xlu0 %509
    %v511 = vsel %vm468, %v463, -inf
    %512 = vmax.xlane.f32.xlu0 %v511
    %v513 = vpop.xlane.xlu0 %512
    %v514 = vsel %vm468, %v466, -inf
    %515 = vmax.xlane.f32.xlu0 %v514
    %v516 = vpop.xlane.xlu0 %515
    %v517 = vsub.f32 %v218, %v471
    %v518 = vsub.f32 %v221, %v474
    %v519 = vsub.f32 %v253, %v477
    %v520 = vsub.f32 %v256, %v480
    %v521 = vsub.f32 %v288, %v483
    %v522 = vsub.f32 %v291, %v486
    %v523 = vsub.f32 %v323, %v489
    %v524 = vsub.f32 %v326, %v492
    %v525 = vsub.f32 %v358, %v495
    %v526 = vsub.f32 %v361, %v498
    %v527 = vsub.f32 %v393, %v501
    %v528 = vsub.f32 %v396, %v504
    %v529 = vsub.f32 %v428, %v507
    %v530 = vsub.f32 %v431, %v510
    %v531 = vsub.f32 %v463, %v513
    %v532 = vsub.f32 %v466, %v516
    %v533 = vmul.f32 %v517, 1.442695
    %v534 = vpow.pop %v533
    %v535 = vmul.f32 %v518, 1.442695
    %v536 = vpow.pop %v535
    %v537 = vmul.f32 %v519, 1.442695
    %v538 = vpow.pop %v537
    %v539 = vmul.f32 %v520, 1.442695
    %v540 = vpow.pop %v539
    %v541 = vmul.f32 %v521, 1.442695
    %v542 = vpow.pop %v541
    %v543 = vmul.f32 %v522, 1.442695
    %v544 = vpow.pop %v543
    %v545 = vmul.f32 %v523, 1.442695
    %v546 = vpow.pop %v545
    %v547 = vmul.f32 %v524, 1.442695
    %v548 = vpow.pop %v547
    %v549 = vmul.f32 %v525, 1.442695
    %v550 = vpow.pop %v549
    %v551 = vmul.f32 %v526, 1.442695
    %v552 = vpow.pop %v551
    %v553 = vmul.f32 %v527, 1.442695
    %v554 = vpow.pop %v553
    %v555 = vmul.f32 %v528, 1.442695
    %v556 = vpow.pop %v555
    %v557 = vmul.f32 %v529, 1.442695
    %v558 = vpow.pop %v557
    %v559 = vmul.f32 %v530, 1.442695
    %v560 = vpow.pop %v559
    %v561 = vmul.f32 %v531, 1.442695
    %v562 = vpow.pop %v561
    %v563 = vmul.f32 %v532, 1.442695
    %v564 = vpow.pop %v563
    %v565 = vsel %vm468, %v534, 0.0
    %566 = vadd.xlane.f32.xlu0 %v565
    %v567 = vpop.xlane.xlu0 %566
    %v568 = vsel %vm468, %v536, 0.0
    %569 = vadd.xlane.f32.xlu0 %v568
    %v570 = vpop.xlane.xlu0 %569
    %v571 = vsel %vm468, %v538, 0.0
    %572 = vadd.xlane.f32.xlu0 %v571
    %v573 = vpop.xlane.xlu0 %572
    %v574 = vsel %vm468, %v540, 0.0
    %575 = vadd.xlane.f32.xlu0 %v574
    %v576 = vpop.xlane.xlu0 %575
    %v577 = vsel %vm468, %v542, 0.0
    %578 = vadd.xlane.f32.xlu0 %v577
    %v579 = vpop.xlane.xlu0 %578
    %v580 = vsel %vm468, %v544, 0.0
    %581 = vadd.xlane.f32.xlu0 %v580
    %v582 = vpop.xlane.xlu0 %581
    %v583 = vsel %vm468, %v546, 0.0
    %584 = vadd.xlane.f32.xlu0 %v583
    %v585 = vpop.xlane.xlu0 %584
    %v586 = vsel %vm468, %v548, 0.0
    %587 = vadd.xlane.f32.xlu0 %v586
    %v588 = vpop.xlane.xlu0 %587
    %v589 = vsel %vm468, %v550, 0.0
    %590 = vadd.xlane.f32.xlu0 %v589
    %v591 = vpop.xlane.xlu0 %590
    %v592 = vsel %vm468, %v552, 0.0
    %593 = vadd.xlane.f32.xlu0 %v592
    %v594 = vpop.xlane.xlu0 %593
    %v595 = vsel %vm468, %v554, 0.0
    %596 = vadd.xlane.f32.xlu0 %v595
    %v597 = vpop.xlane.xlu0 %596
    %v598 = vsel %vm468, %v556, 0.0
    %599 = vadd.xlane.f32.xlu0 %v598
    %v600 = vpop.xlane.xlu0 %599
    %v601 = vsel %vm468, %v558, 0.0
    %602 = vadd.xlane.f32.xlu0 %v601
    %v603 = vpop.xlane.xlu0 %602
    %v604 = vsel %vm468, %v560, 0.0
    %605 = vadd.xlane.f32.xlu0 %v604
    %v606 = vpop.xlane.xlu0 %605
    %v607 = vsel %vm468, %v562, 0.0
    %608 = vadd.xlane.f32.xlu0 %v607
    %v609 = vpop.xlane.xlu0 %608
    %v610 = vsel %vm468, %v564, 0.0
    %611 = vadd.xlane.f32.xlu0 %v610
    %v612 = vpop.xlane.xlu0 %611
    %v613 = vrcp.pop %v567
    %v614 = vmul.f32 %v567, %v613
    %v615 = vsub.f32 1.0, %v614
    %v616 = vmul.f32 %v613, %v615
    %v617 = vadd.f32 %v613, %v616
    %vm618 = vweird.f32 %v567
    %vm619 = vweird.f32 %v613
    %vm620 = vmor %vm618, %vm619
    %v621 = vsel %vm620, %v613, %v617
    %v622 = vand.u32 2147483647, %v567
    %vm623 = vcmp.eq.f32.partialorder %v622, 8.507059e+37
    %v624 = vand.u32 %v567, 2147483648
    %v625 = vor.u32 1.1754944e-38, %v624
    %v626 = vsel %vm623, %v625, %v621
    %v627 = vmul.f32 %v534, %v626
    %v628 = vrcp.pop %v570
    %v629 = vmul.f32 %v570, %v628
    %v630 = vsub.f32 1.0, %v629
    %v631 = vmul.f32 %v628, %v630
    %v632 = vadd.f32 %v628, %v631
    %vm633 = vweird.f32 %v570
    %vm634 = vweird.f32 %v628
    %vm635 = vmor %vm633, %vm634
    %v636 = vsel %vm635, %v628, %v632
    %v637 = vand.u32 2147483647, %v570
    %vm638 = vcmp.eq.f32.partialorder %v637, 8.507059e+37
    %v639 = vand.u32 %v570, 2147483648
    %v640 = vor.u32 1.1754944e-38, %v639
    %v641 = vsel %vm638, %v640, %v636
    %v642 = vmul.f32 %v536, %v641
    %v643 = vrcp.pop %v573
    %v644 = vmul.f32 %v573, %v643
    %v645 = vsub.f32 1.0, %v644
    %v646 = vmul.f32 %v643, %v645
    %v647 = vadd.f32 %v643, %v646
    %vm648 = vweird.f32 %v573
    %vm649 = vweird.f32 %v643
    %vm650 = vmor %vm648, %vm649
    %v651 = vsel %vm650, %v643, %v647
    %v652 = vand.u32 2147483647, %v573
    %vm653 = vcmp.eq.f32.partialorder %v652, 8.507059e+37
    %v654 = vand.u32 %v573, 2147483648
    %v655 = vor.u32 1.1754944e-38, %v654
    %v656 = vsel %vm653, %v655, %v651
    %v657 = vmul.f32 %v538, %v656
    %v658 = vrcp.pop %v576
    %v659 = vmul.f32 %v576, %v658
    %v660 = vsub.f32 1.0, %v659
    %v661 = vmul.f32 %v658, %v660
    %v662 = vadd.f32 %v658, %v661
    %vm663 = vweird.f32 %v576
    %vm664 = vweird.f32 %v658
    %vm665 = vmor %vm663, %vm664
    %v666 = vsel %vm665, %v658, %v662
    %v667 = vand.u32 2147483647, %v576
    %vm668 = vcmp.eq.f32.partialorder %v667, 8.507059e+37
    %v669 = vand.u32 %v576, 2147483648
    %v670 = vor.u32 1.1754944e-38, %v669
    %v671 = vsel %vm668, %v670, %v666
    %v672 = vmul.f32 %v540, %v671
    %v673 = vrcp.pop %v579
    %v674 = vmul.f32 %v579, %v673
    %v675 = vsub.f32 1.0, %v674
    %v676 = vmul.f32 %v673, %v675
    %v677 = vadd.f32 %v673, %v676
    %vm678 = vweird.f32 %v579
    %vm679 = vweird.f32 %v673
    %vm680 = vmor %vm678, %vm679
    %v681 = vsel %vm680, %v673, %v677
    %v682 = vand.u32 2147483647, %v579
    %vm683 = vcmp.eq.f32.partialorder %v682, 8.507059e+37
    %v684 = vand.u32 %v579, 2147483648
    %v685 = vor.u32 1.1754944e-38, %v684
    %v686 = vsel %vm683, %v685, %v681
    %v687 = vmul.f32 %v542, %v686
    %v688 = vrcp.pop %v582
    %v689 = vmul.f32 %v582, %v688
    %v690 = vsub.f32 1.0, %v689
    %v691 = vmul.f32 %v688, %v690
    %v692 = vadd.f32 %v688, %v691
    %vm693 = vweird.f32 %v582
    %vm694 = vweird.f32 %v688
    %vm695 = vmor %vm693, %vm694
    %v696 = vsel %vm695, %v688, %v692
    %v697 = vand.u32 2147483647, %v582
    %vm698 = vcmp.eq.f32.partialorder %v697, 8.507059e+37
    %v699 = vand.u32 %v582, 2147483648
    %v700 = vor.u32 1.1754944e-38, %v699
    %v701 = vsel %vm698, %v700, %v696
    %v702 = vmul.f32 %v544, %v701
    %v703 = vrcp.pop %v585
    %v704 = vmul.f32 %v585, %v703
    %v705 = vsub.f32 1.0, %v704
    %v706 = vmul.f32 %v703, %v705
    %v707 = vadd.f32 %v703, %v706
    %vm708 = vweird.f32 %v585
    %vm709 = vweird.f32 %v703
    %vm710 = vmor %vm708, %vm709
    %v711 = vsel %vm710, %v703, %v707
    %v712 = vand.u32 2147483647, %v585
    %vm713 = vcmp.eq.f32.partialorder %v712, 8.507059e+37
    %v714 = vand.u32 %v585, 2147483648
    %v715 = vor.u32 1.1754944e-38, %v714
    %v716 = vsel %vm713, %v715, %v711
    %v717 = vmul.f32 %v546, %v716
    %v718 = vrcp.pop %v588
    %v719 = vmul.f32 %v588, %v718
    %v720 = vsub.f32 1.0, %v719
    %v721 = vmul.f32 %v718, %v720
    %v722 = vadd.f32 %v718, %v721
    %vm723 = vweird.f32 %v588
    %vm724 = vweird.f32 %v718
    %vm725 = vmor %vm723, %vm724
    %v726 = vsel %vm725, %v718, %v722
    %v727 = vand.u32 2147483647, %v588
    %vm728 = vcmp.eq.f32.partialorder %v727, 8.507059e+37
    %v729 = vand.u32 %v588, 2147483648
    %v730 = vor.u32 1.1754944e-38, %v729
    %v731 = vsel %vm728, %v730, %v726
    %v732 = vmul.f32 %v548, %v731
    %v733 = vrcp.pop %v591
    %v734 = vmul.f32 %v591, %v733
    %v735 = vsub.f32 1.0, %v734
    %v736 = vmul.f32 %v733, %v735
    %v737 = vadd.f32 %v733, %v736
    %vm738 = vweird.f32 %v591
    %vm739 = vweird.f32 %v733
    %vm740 = vmor %vm738, %vm739
    %v741 = vsel %vm740, %v733, %v737
    %v742 = vand.u32 2147483647, %v591
    %vm743 = vcmp.eq.f32.partialorder %v742, 8.507059e+37
    %v744 = vand.u32 %v591, 2147483648
    %v745 = vor.u32 1.1754944e-38, %v744
    %v746 = vsel %vm743, %v745, %v741
    %v747 = vmul.f32 %v550, %v746
    %v748 = vrcp.pop %v594
    %v749 = vmul.f32 %v594, %v748
    %v750 = vsub.f32 1.0, %v749
    %v751 = vmul.f32 %v748, %v750
    %v752 = vadd.f32 %v748, %v751
    %vm753 = vweird.f32 %v594
    %vm754 = vweird.f32 %v748
    %vm755 = vmor %vm753, %vm754
    %v756 = vsel %vm755, %v748, %v752
    %v757 = vand.u32 2147483647, %v594
    %vm758 = vcmp.eq.f32.partialorder %v757, 8.507059e+37
    %v759 = vand.u32 %v594, 2147483648
    %v760 = vor.u32 1.1754944e-38, %v759
    %v761 = vsel %vm758, %v760, %v756
    %v762 = vmul.f32 %v552, %v761
    %v763 = vrcp.pop %v597
    %v764 = vmul.f32 %v597, %v763
    %v765 = vsub.f32 1.0, %v764
    %v766 = vmul.f32 %v763, %v765
    %v767 = vadd.f32 %v763, %v766
    %vm768 = vweird.f32 %v597
    %vm769 = vweird.f32 %v763
    %vm770 = vmor %vm768, %vm769
    %v771 = vsel %vm770, %v763, %v767
    %v772 = vand.u32 2147483647, %v597
    %vm773 = vcmp.eq.f32.partialorder %v772, 8.507059e+37
    %v774 = vand.u32 %v597, 2147483648
    %v775 = vor.u32 1.1754944e-38, %v774
    %v776 = vsel %vm773, %v775, %v771
    %v777 = vmul.f32 %v554, %v776
    %v778 = vrcp.pop %v600
    %v779 = vmul.f32 %v600, %v778
    %v780 = vsub.f32 1.0, %v779
    %v781 = vmul.f32 %v778, %v780
    %v782 = vadd.f32 %v778, %v781
    %vm783 = vweird.f32 %v600
    %vm784 = vweird.f32 %v778
    %vm785 = vmor %vm783, %vm784
    %v786 = vsel %vm785, %v778, %v782
    %v787 = vand.u32 2147483647, %v600
    %vm788 = vcmp.eq.f32.partialorder %v787, 8.507059e+37
    %v789 = vand.u32 %v600, 2147483648
    %v790 = vor.u32 1.1754944e-38, %v789
    %v791 = vsel %vm788, %v790, %v786
    %v792 = vmul.f32 %v556, %v791
    %v793 = vrcp.pop %v603
    %v794 = vmul.f32 %v603, %v793
    %v795 = vsub.f32 1.0, %v794
    %v796 = vmul.f32 %v793, %v795
    %v797 = vadd.f32 %v793, %v796
    %vm798 = vweird.f32 %v603
    %vm799 = vweird.f32 %v793
    %vm800 = vmor %vm798, %vm799
    %v801 = vsel %vm800, %v793, %v797
    %v802 = vand.u32 2147483647, %v603
    %vm803 = vcmp.eq.f32.partialorder %v802, 8.507059e+37
    %v804 = vand.u32 %v603, 2147483648
    %v805 = vor.u32 1.1754944e-38, %v804
    %v806 = vsel %vm803, %v805, %v801
    %v807 = vmul.f32 %v558, %v806
    %v808 = vrcp.pop %v606
    %v809 = vmul.f32 %v606, %v808
    %v810 = vsub.f32 1.0, %v809
    %v811 = vmul.f32 %v808, %v810
    %v812 = vadd.f32 %v808, %v811
    %vm813 = vweird.f32 %v606
    %vm814 = vweird.f32 %v808
    %vm815 = vmor %vm813, %vm814
    %v816 = vsel %vm815, %v808, %v812
    %v817 = vand.u32 2147483647, %v606
    %vm818 = vcmp.eq.f32.partialorder %v817, 8.507059e+37
    %v819 = vand.u32 %v606, 2147483648
    %v820 = vor.u32 1.1754944e-38, %v819
    %v821 = vsel %vm818, %v820, %v816
    %v822 = vmul.f32 %v560, %v821
    %v823 = vrcp.pop %v609
    %v824 = vmul.f32 %v609, %v823
    %v825 = vsub.f32 1.0, %v824
    %v826 = vmul.f32 %v823, %v825
    %v827 = vadd.f32 %v823, %v826
    %vm828 = vweird.f32 %v609
    %vm829 = vweird.f32 %v823
    %vm830 = vmor %vm828, %vm829
    %v831 = vsel %vm830, %v823, %v827
    %v832 = vand.u32 2147483647, %v609
    %vm833 = vcmp.eq.f32.partialorder %v832, 8.507059e+37
    %v834 = vand.u32 %v609, 2147483648
    %v835 = vor.u32 1.1754944e-38, %v834
    %v836 = vsel %vm833, %v835, %v831
    %v837 = vmul.f32 %v562, %v836
    %v838 = vrcp.pop %v612
    %v839 = vmul.f32 %v612, %v838
    %v840 = vsub.f32 1.0, %v839
    %v841 = vmul.f32 %v838, %v840
    %v842 = vadd.f32 %v838, %v841
    %vm843 = vweird.f32 %v612
    %vm844 = vweird.f32 %v838
    %vm845 = vmor %vm843, %vm844
    %v846 = vsel %vm845, %v838, %v842
    %v847 = vand.u32 2147483647, %v612
    %vm848 = vcmp.eq.f32.partialorder %v847, 8.507059e+37
    %v849 = vand.u32 %v612, 2147483648
    %v850 = vor.u32 1.1754944e-38, %v849
    %v851 = vsel %vm848, %v850, %v846
    %v852 = vmul.f32 %v564, %v851
    %853 = vrot.lane.b32.xlu0 %v132, 64
    %v854 = vpop.permute.xlu0 %853
    %855 = vrot.lane.b32.xlu0 %v135, 64
    %v856 = vpop.permute.xlu0 %855
    %v860 = vsel %vm468, %v627, 0
    %v863 = vsel %vm468, %v642, 0
    %865 = vmatpush.msra.mxu0 0.0
    %866 = vmatpush.msra.mxu0 0.0
    %867 = vmatpush.msra.mxu0 0.0
    %868 = vmatpush.msra.mxu0 0.0
    %869 = vmatpush.msra.mxu0 0.0
    %870 = vmatpush.msra.mxu0 0.0
    %871 = vmatpush.msra.mxu0 0.0
    %872 = vmatpush.msra.mxu0 0.0
    %873 = vmatpush.msra.mxu0 0.0
    %874 = vmatpush.msra.mxu0 0.0
    %875 = vmatpush.msra.mxu0 0.0
    %876 = vmatpush.msra.mxu0 0.0
    %877 = vmatpush.msra.mxu0 0.0
    %878 = vmatpush.msra.mxu0 0.0
    %879 = vmatpush.msra.mxu0 %v856
    %880 = vmatpush.msra.mxu0 %v854
    %881 = vmatmul.f32.gmra.mxu0 %v860
    %v882 = vpop.f32.mrf.mxu0
    %v883 = vadd.f32 0.0, %v882
    %884 = vmatmul.f32.gmra.mxu0 %v863
    %v885 = vpop.f32.mrf.mxu0
    %v886 = vadd.f32 0.0, %v885
    %887 = vdwg.mxu0
    %888 = vrot.lane.b32.xlu0 %v138, 64
    %v889 = vpop.permute.xlu0 %888
    %890 = vrot.lane.b32.xlu0 %v141, 64
    %v891 = vpop.permute.xlu0 %890
    %v895 = vsel %vm468, %v657, 0
    %v898 = vsel %vm468, %v672, 0
    %900 = vmatpush.msra.mxu0 0.0
    %901 = vmatpush.msra.mxu0 0.0
    %902 = vmatpush.msra.mxu0 0.0
    %903 = vmatpush.msra.mxu0 0.0
    %904 = vmatpush.msra.mxu0 0.0
    %905 = vmatpush.msra.mxu0 0.0
    %906 = vmatpush.msra.mxu0 0.0
    %907 = vmatpush.msra.mxu0 0.0
    %908 = vmatpush.msra.mxu0 0.0
    %909 = vmatpush.msra.mxu0 0.0
    %910 = vmatpush.msra.mxu0 0.0
    %911 = vmatpush.msra.mxu0 0.0
    %912 = vmatpush.msra.mxu0 0.0
    %913 = vmatpush.msra.mxu0 0.0
    %914 = vmatpush.msra.mxu0 %v891
    %915 = vmatpush.msra.mxu0 %v889
    %916 = vmatmul.f32.gmra.mxu0 %v895
    %v917 = vpop.f32.mrf.mxu0
    %v918 = vadd.f32 0.0, %v917
    %919 = vmatmul.f32.gmra.mxu0 %v898
    %v920 = vpop.f32.mrf.mxu0
    %v921 = vadd.f32 0.0, %v920
    %922 = vdwg.mxu0
    %923 = vrot.lane.b32.xlu0 %v148, 64
    %v924 = vpop.permute.xlu0 %923
    %925 = vrot.lane.b32.xlu0 %v150, 64
    %v926 = vpop.permute.xlu0 %925
    %v930 = vsel %vm468, %v687, 0
    %v933 = vsel %vm468, %v702, 0
    %935 = vmatpush.msra.mxu0 0.0
    %936 = vmatpush.msra.mxu0 0.0
    %937 = vmatpush.msra.mxu0 0.0
    %938 = vmatpush.msra.mxu0 0.0
    %939 = vmatpush.msra.mxu0 0.0
    %940 = vmatpush.msra.mxu0 0.0
    %941 = vmatpush.msra.mxu0 0.0
    %942 = vmatpush.msra.mxu0 0.0
    %943 = vmatpush.msra.mxu0 0.0
    %944 = vmatpush.msra.mxu0 0.0
    %945 = vmatpush.msra.mxu0 0.0
    %946 = vmatpush.msra.mxu0 0.0
    %947 = vmatpush.msra.mxu0 0.0
    %948 = vmatpush.msra.mxu0 0.0
    %949 = vmatpush.msra.mxu0 %v926
    %950 = vmatpush.msra.mxu0 %v924
    %951 = vmatmul.f32.gmra.mxu0 %v930
    %v952 = vpop.f32.mrf.mxu0
    %v953 = vadd.f32 0.0, %v952
    %954 = vmatmul.f32.gmra.mxu0 %v933
    %v955 = vpop.f32.mrf.mxu0
    %v956 = vadd.f32 0.0, %v955
    %957 = vdwg.mxu0
    %958 = vrot.lane.b32.xlu0 %v152, 64
    %v959 = vpop.permute.xlu0 %958
    %960 = vrot.lane.b32.xlu0 %v154, 64
    %v961 = vpop.permute.xlu0 %960
    %v965 = vsel %vm468, %v717, 0
    %v968 = vsel %vm468, %v732, 0
    %970 = vmatpush.msra.mxu0 0.0
    %971 = vmatpush.msra.mxu0 0.0
    %972 = vmatpush.msra.mxu0 0.0
    %973 = vmatpush.msra.mxu0 0.0
    %974 = vmatpush.msra.mxu0 0.0
    %975 = vmatpush.msra.mxu0 0.0
    %976 = vmatpush.msra.mxu0 0.0
    %977 = vmatpush.msra.mxu0 0.0
    %978 = vmatpush.msra.mxu0 0.0
    %979 = vmatpush.msra.mxu0 0.0
    %980 = vmatpush.msra.mxu0 0.0
    %981 = vmatpush.msra.mxu0 0.0
    %982 = vmatpush.msra.mxu0 0.0
    %983 = vmatpush.msra.mxu0 0.0
    %984 = vmatpush.msra.mxu0 %v961
    %985 = vmatpush.msra.mxu0 %v959
    %986 = vmatmul.f32.gmra.mxu0 %v965
    %v987 = vpop.f32.mrf.mxu0
    %v988 = vadd.f32 0.0, %v987
    %989 = vmatmul.f32.gmra.mxu0 %v968
    %v990 = vpop.f32.mrf.mxu0
    %v991 = vadd.f32 0.0, %v990
    %992 = vdwg.mxu0
    %993 = vrot.lane.b32.xlu0 %v156, 64
    %v994 = vpop.permute.xlu0 %993
    %995 = vrot.lane.b32.xlu0 %v158, 64
    %v996 = vpop.permute.xlu0 %995
    %v1000 = vsel %vm468, %v747, 0
    %v1003 = vsel %vm468, %v762, 0
    %1005 = vmatpush.msra.mxu0 0.0
    %1006 = vmatpush.msra.mxu0 0.0
    %1007 = vmatpush.msra.mxu0 0.0
    %1008 = vmatpush.msra.mxu0 0.0
    %1009 = vmatpush.msra.mxu0 0.0
    %1010 = vmatpush.msra.mxu0 0.0
    %1011 = vmatpush.msra.mxu0 0.0
    %1012 = vmatpush.msra.mxu0 0.0
    %1013 = vmatpush.msra.mxu0 0.0
    %1014 = vmatpush.msra.mxu0 0.0
    %1015 = vmatpush.msra.mxu0 0.0
    %1016 = vmatpush.msra.mxu0 0.0
    %1017 = vmatpush.msra.mxu0 0.0
    %1018 = vmatpush.msra.mxu0 0.0
    %1019 = vmatpush.msra.mxu0 %v996
    %1020 = vmatpush.msra.mxu0 %v994
    %1021 = vmatmul.f32.gmra.mxu0 %v1000
    %v1022 = vpop.f32.mrf.mxu0
    %v1023 = vadd.f32 0.0, %v1022
    %1024 = vmatmul.f32.gmra.mxu0 %v1003
    %v1025 = vpop.f32.mrf.mxu0
    %v1026 = vadd.f32 0.0, %v1025
    %1027 = vdwg.mxu0
    %1028 = vrot.lane.b32.xlu0 %v160, 64
    %v1029 = vpop.permute.xlu0 %1028
    %1030 = vrot.lane.b32.xlu0 %v162, 64
    %v1031 = vpop.permute.xlu0 %1030
    %v1035 = vsel %vm468, %v777, 0
    %v1038 = vsel %vm468, %v792, 0
    %1040 = vmatpush.msra.mxu0 0.0
    %1041 = vmatpush.msra.mxu0 0.0
    %1042 = vmatpush.msra.mxu0 0.0
    %1043 = vmatpush.msra.mxu0 0.0
    %1044 = vmatpush.msra.mxu0 0.0
    %1045 = vmatpush.msra.mxu0 0.0
    %1046 = vmatpush.msra.mxu0 0.0
    %1047 = vmatpush.msra.mxu0 0.0
    %1048 = vmatpush.msra.mxu0 0.0
    %1049 = vmatpush.msra.mxu0 0.0
    %1050 = vmatpush.msra.mxu0 0.0
    %1051 = vmatpush.msra.mxu0 0.0
    %1052 = vmatpush.msra.mxu0 0.0
    %1053 = vmatpush.msra.mxu0 0.0
    %1054 = vmatpush.msra.mxu0 %v1031
    %1055 = vmatpush.msra.mxu0 %v1029
    %1056 = vmatmul.f32.gmra.mxu0 %v1035
    %v1057 = vpop.f32.mrf.mxu0
    %v1058 = vadd.f32 0.0, %v1057
    %1059 = vmatmul.f32.gmra.mxu0 %v1038
    %v1060 = vpop.f32.mrf.mxu0
    %v1061 = vadd.f32 0.0, %v1060
    %1062 = vdwg.mxu0
    %1063 = vrot.lane.b32.xlu0 %v164, 64
    %v1064 = vpop.permute.xlu0 %1063
    %1065 = vrot.lane.b32.xlu0 %v166, 64
    %v1066 = vpop.permute.xlu0 %1065
    %v1070 = vsel %vm468, %v807, 0
    %v1073 = vsel %vm468, %v822, 0
    %1075 = vmatpush.msra.mxu0 0.0
    %1076 = vmatpush.msra.mxu0 0.0
    %1077 = vmatpush.msra.mxu0 0.0
    %1078 = vmatpush.msra.mxu0 0.0
    %1079 = vmatpush.msra.mxu0 0.0
    %1080 = vmatpush.msra.mxu0 0.0
    %1081 = vmatpush.msra.mxu0 0.0
    %1082 = vmatpush.msra.mxu0 0.0
    %1083 = vmatpush.msra.mxu0 0.0
    %1084 = vmatpush.msra.mxu0 0.0
    %1085 = vmatpush.msra.mxu0 0.0
    %1086 = vmatpush.msra.mxu0 0.0
    %1087 = vmatpush.msra.mxu0 0.0
    %1088 = vmatpush.msra.mxu0 0.0
    %1089 = vmatpush.msra.mxu0 %v1066
    %1090 = vmatpush.msra.mxu0 %v1064
    %1091 = vmatmul.f32.gmra.mxu0 %v1070
    %v1092 = vpop.f32.mrf.mxu0
    %v1093 = vadd.f32 0.0, %v1092
    %1094 = vmatmul.f32.gmra.mxu0 %v1073
    %v1095 = vpop.f32.mrf.mxu0
    %v1096 = vadd.f32 0.0, %v1095
    %1097 = vdwg.mxu0
    %1098 = vrot.lane.b32.xlu0 %v168, 64
    %v1099 = vpop.permute.xlu0 %1098
    %1100 = vrot.lane.b32.xlu0 %v170, 64
    %v1101 = vpop.permute.xlu0 %1100
    %v1105 = vsel %vm468, %v837, 0
    %v1108 = vsel %vm468, %v852, 0
    %1110 = vmatpush.msra.mxu0 0.0
    %1111 = vmatpush.msra.mxu0 0.0
    %1112 = vmatpush.msra.mxu0 0.0
    %1113 = vmatpush.msra.mxu0 0.0
    %1114 = vmatpush.msra.mxu0 0.0
    %1115 = vmatpush.msra.mxu0 0.0
    %1116 = vmatpush.msra.mxu0 0.0
    %1117 = vmatpush.msra.mxu0 0.0
    %1118 = vmatpush.msra.mxu0 0.0
    %1119 = vmatpush.msra.mxu0 0.0
    %1120 = vmatpush.msra.mxu0 0.0
    %1121 = vmatpush.msra.mxu0 0.0
    %1122 = vmatpush.msra.mxu0 0.0
    %1123 = vmatpush.msra.mxu0 0.0
    %1124 = vmatpush.msra.mxu0 %v1101
    %1125 = vmatpush.msra.mxu0 %v1099
    %1126 = vmatmul.f32.gmra.mxu0 %v1105
    %v1127 = vpop.f32.mrf.mxu0
    %v1128 = vadd.f32 0.0, %v1127
    %1129 = vmatmul.f32.gmra.mxu0 %v1108
    %v1130 = vpop.f32.mrf.mxu0
    %v1131 = vadd.f32 0.0, %v1130
    %1132 = vdwg.mxu0
    %v1133 = vld [vmem:[%s2] sm:$0xff]
    %v1134 = vld [vmem:[%s2 + $0x8] sm:$0xff]
    %v1135 = vld [vmem:[%s2 + $0x10] sm:$0xff]
    %v1136 = vld [vmem:[%s2 + $0x18] sm:$0xff]
    %v1138 = vsel %vm191, %v883, 0
    %v1141 = vsel %vm191, %v886, 0
    %v1144 = vsel %vm191, %v918, 0
    %v1147 = vsel %vm191, %v921, 0
    %1149 = vmatpush.msra.mxu0 0.0
    %1150 = vmatpush.msra.mxu0 0.0
    %1151 = vmatpush.msra.mxu0 0.0
    %1152 = vmatpush.msra.mxu0 0.0
    %1153 = vmatpush.msra.mxu0 0.0
    %1154 = vmatpush.msra.mxu0 0.0
    %1155 = vmatpush.msra.mxu0 0.0
    %1156 = vmatpush.msra.mxu0 0.0
    %1157 = vmatpush.msra.mxu0 0.0
    %1158 = vmatpush.msra.mxu0 0.0
    %1159 = vmatpush.msra.mxu0 0.0
    %1160 = vmatpush.msra.mxu0 0.0
    %1161 = vmatpush.msra.mxu0 0.0
    %1162 = vmatpush.msra.mxu0 0.0
    %1163 = vmatpush.msra.mxu0 0.0
    %1164 = vmatpush.msra.mxu0 %v1133
    %1165 = vmatmul.f32.gmra.mxu0 %v1138
    %v1166 = vpop.f32.mrf.mxu0
    %v1167 = vadd.f32 0.0, %v1166
    %1168 = vmatmul.f32.gmra.mxu0 %v1141
    %v1169 = vpop.f32.mrf.mxu0
    %v1170 = vadd.f32 0.0, %v1169
    %1171 = vmatmul.f32.gmra.mxu0 %v1144
    %v1172 = vpop.f32.mrf.mxu0
    %v1173 = vadd.f32 0.0, %v1172
    %1174 = vmatmul.f32.gmra.mxu0 %v1147
    %v1175 = vpop.f32.mrf.mxu0
    %v1176 = vadd.f32 0.0, %v1175
    %1177 = vdwg.mxu0
    %v1179 = vsel %vm191, %v953, 0
    %v1182 = vsel %vm191, %v956, 0
    %v1185 = vsel %vm191, %v988, 0
    %v1188 = vsel %vm191, %v991, 0
    %1190 = vmatpush.msra.mxu0 0.0
    %1191 = vmatpush.msra.mxu0 0.0
    %1192 = vmatpush.msra.mxu0 0.0
    %1193 = vmatpush.msra.mxu0 0.0
    %1194 = vmatpush.msra.mxu0 0.0
    %1195 = vmatpush.msra.mxu0 0.0
    %1196 = vmatpush.msra.mxu0 0.0
    %1197 = vmatpush.msra.mxu0 0.0
    %1198 = vmatpush.msra.mxu0 0.0
    %1199 = vmatpush.msra.mxu0 0.0
    %1200 = vmatpush.msra.mxu0 0.0
    %1201 = vmatpush.msra.mxu0 0.0
    %1202 = vmatpush.msra.mxu0 0.0
    %1203 = vmatpush.msra.mxu0 0.0
    %1204 = vmatpush.msra.mxu0 0.0
    %1205 = vmatpush.msra.mxu0 %v1134
    %1206 = vmatmul.f32.gmra.mxu0 %v1179
    %v1207 = vpop.f32.mrf.mxu0
    %v1208 = vadd.f32 0.0, %v1207
    %1209 = vmatmul.f32.gmra.mxu0 %v1182
    %v1210 = vpop.f32.mrf.mxu0
    %v1211 = vadd.f32 0.0, %v1210
    %1212 = vmatmul.f32.gmra.mxu0 %v1185
    %v1213 = vpop.f32.mrf.mxu0
    %v1214 = vadd.f32 0.0, %v1213
    %1215 = vmatmul.f32.gmra.mxu0 %v1188
    %v1216 = vpop.f32.mrf.mxu0
    %v1217 = vadd.f32 0.0, %v1216
    %1218 = vdwg.mxu0
    %v1220 = vsel %vm191, %v1023, 0
    %v1223 = vsel %vm191, %v1026, 0
    %v1226 = vsel %vm191, %v1058, 0
    %v1229 = vsel %vm191, %v1061, 0
    %1231 = vmatpush.msra.mxu0 0.0
    %1232 = vmatpush.msra.mxu0 0.0
    %1233 = vmatpush.msra.mxu0 0.0
    %1234 = vmatpush.msra.mxu0 0.0
    %1235 = vmatpush.msra.mxu0 0.0
    %1236 = vmatpush.msra.mxu0 0.0
    %1237 = vmatpush.msra.mxu0 0.0
    %1238 = vmatpush.msra.mxu0 0.0
    %1239 = vmatpush.msra.mxu0 0.0
    %1240 = vmatpush.msra.mxu0 0.0
    %1241 = vmatpush.msra.mxu0 0.0
    %1242 = vmatpush.msra.mxu0 0.0
    %1243 = vmatpush.msra.mxu0 0.0
    %1244 = vmatpush.msra.mxu0 0.0
    %1245 = vmatpush.msra.mxu0 0.0
    %1246 = vmatpush.msra.mxu0 %v1135
    %1247 = vmatmul.f32.gmra.mxu0 %v1220
    %v1248 = vpop.f32.mrf.mxu0
    %v1249 = vadd.f32 0.0, %v1248
    %1250 = vmatmul.f32.gmra.mxu0 %v1223
    %v1251 = vpop.f32.mrf.mxu0
    %v1252 = vadd.f32 0.0, %v1251
    %1253 = vmatmul.f32.gmra.mxu0 %v1226
    %v1254 = vpop.f32.mrf.mxu0
    %v1255 = vadd.f32 0.0, %v1254
    %1256 = vmatmul.f32.gmra.mxu0 %v1229
    %v1257 = vpop.f32.mrf.mxu0
    %v1258 = vadd.f32 0.0, %v1257
    %1259 = vdwg.mxu0
    %v1261 = vsel %vm191, %v1093, 0
    %v1264 = vsel %vm191, %v1096, 0
    %v1267 = vsel %vm191, %v1128, 0
    %v1270 = vsel %vm191, %v1131, 0
    %1272 = vmatpush.msra.mxu0 0.0
    %1273 = vmatpush.msra.mxu0 0.0
    %1274 = vmatpush.msra.mxu0 0.0
    %1275 = vmatpush.msra.mxu0 0.0
    %1276 = vmatpush.msra.mxu0 0.0
    %1277 = vmatpush.msra.mxu0 0.0
    %1278 = vmatpush.msra.mxu0 0.0
    %1279 = vmatpush.msra.mxu0 0.0
    %1280 = vmatpush.msra.mxu0 0.0
    %1281 = vmatpush.msra.mxu0 0.0
    %1282 = vmatpush.msra.mxu0 0.0
    %1283 = vmatpush.msra.mxu0 0.0
    %1284 = vmatpush.msra.mxu0 0.0
    %1285 = vmatpush.msra.mxu0 0.0
    %1286 = vmatpush.msra.mxu0 0.0
    %1287 = vmatpush.msra.mxu0 %v1136
    %1288 = vmatmul.f32.gmra.mxu0 %v1261
    %v1289 = vpop.f32.mrf.mxu0
    %v1290 = vadd.f32 0.0, %v1289
    %1291 = vmatmul.f32.gmra.mxu0 %v1264
    %v1292 = vpop.f32.mrf.mxu0
    %v1293 = vadd.f32 0.0, %v1292
    %1294 = vmatmul.f32.gmra.mxu0 %v1267
    %v1295 = vpop.f32.mrf.mxu0
    %v1296 = vadd.f32 0.0, %v1295
    %1297 = vmatmul.f32.gmra.mxu0 %v1270
    %v1298 = vpop.f32.mrf.mxu0
    %v1299 = vadd.f32 0.0, %v1298
    %1300 = vdwg.mxu0
    %v1301 = vsel %vm26, %v1167, 0.0
    %v1302 = vsel %vm26, %v1208, 0.0
    %v1303 = vadd.f32 %v1301, %v1302
    %v1304 = vsel %vm26, %v1249, 0.0
    %v1305 = vadd.f32 %v1303, %v1304
    %v1306 = vsel %vm26, %v1290, 0.0
    %v1307 = vadd.f32 %v1305, %v1306
    %v1308 = vsel %vm26, %v1170, 0.0
    %v1309 = vsel %vm26, %v1211, 0.0
    %v1310 = vadd.f32 %v1308, %v1309
    %v1311 = vsel %vm26, %v1252, 0.0
    %v1312 = vadd.f32 %v1310, %v1311
    %v1313 = vsel %vm26, %v1293, 0.0
    %v1314 = vadd.f32 %v1312, %v1313
    %v1315 = vsel %vm26, %v1173, 0.0
    %v1316 = vsel %vm26, %v1214, 0.0
    %v1317 = vadd.f32 %v1315, %v1316
    %v1318 = vsel %vm26, %v1255, 0.0
    %v1319 = vadd.f32 %v1317, %v1318
    %v1320 = vsel %vm26, %v1296, 0.0
    %v1321 = vadd.f32 %v1319, %v1320
    %v1322 = vsel %vm26, %v1176, 0.0
    %v1323 = vsel %vm26, %v1217, 0.0
    %v1324 = vadd.f32 %v1322, %v1323
    %v1325 = vsel %vm26, %v1258, 0.0
    %v1326 = vadd.f32 %v1324, %v1325
    %v1327 = vsel %vm26, %v1299, 0.0
    %v1328 = vadd.f32 %v1326, %v1327
    %v1329 = vadd.f32 %v18, %v1307
    %v1330 = vadd.f32 %v19, %v1314
    %v1331 = vadd.f32 %v20, %v1321
    %v1332 = vadd.f32 %v21, %v1328
    %1333 = vst.msk [vmem:[#allocation2] sm:$0xff] %vm26, %v1329
    %1334 = vst.msk [vmem:[#allocation2 + $0x8] sm:$0xff] %vm26, %v1330
    %1335 = vst.msk [vmem:[#allocation2 + $0x10] sm:$0xff] %vm26, %v1331
    %1336 = vst.msk [vmem:[#allocation2 + $0x18] sm:$0xff] %vm26, %v1332
    // Predicated region
    $region18: #{t5_layer_self_attention.1} parent=1 // pred_check
      _
    $region19: #{t5_layer_self_attention.1} parent=1 // pred_check_branch
      %1338 = sbr.rel (0) target = $region21
    $region20: #{t5_layer_self_attention.1} parent=1 // pred_region
      %1340 = vsyncadd [#allocation3], 0
      %s1341 = sshll.u32 [#allocation2], 4
      %s1342 = int_to_ptr.vmem [resolvable:$true] %s1341
      %s1343 = sshll.u32 %s4, 4
      %s1344 = int_to_ptr.hbm [resolvable:$true] %s1343
      %1349 = dma.vmem_to_hbm [thread:$0]  %s1342, 512, %s1344, [#allocation3], 128, 128, 8
    $region21: #{t5_layer_self_attention.1} parent=1 // pred_fallthru
      _
    // Predicated region
    $region22: #{t5_layer_self_attention.1} parent=1 // pred_check
      _
    $region23: #{t5_layer_self_attention.1} parent=1 // pred_check_branch
      %1351 = sbr.rel (0) target = $region25
    $region24: #{t5_layer_self_attention.1} parent=1 // pred_region
      %1353 = dma.done [#allocation3], 512
    $region25: #{t5_layer_self_attention.1} parent=1 // pred_fallthru
      _
    %1354 = vsyncpa [#allocation3], 1

</llo_original>
